<compile_context>
chip_gen: v7x
topology: tpu7x:2x2x1
jax: 0.10.0
libtpu: 0.0.40
codegen_flags: <defaults>
</compile_context>

<pallas_src>
import functools

import jax
import jax.numpy as jnp
from jax.experimental import pallas as pl
from jax.experimental.pallas import tpu as pltpu

_LANE = 128
# Resident-A (fused) threshold: keep A^T (plus a possible second pipeline
# buffer) well under the v7x-safe scoped-VMEM budget (v7x physical = 64 MiB).
_FUSED_A_BYTES = 16 * 1024 * 1024
_VMEM_LIMIT = 48 * 1024 * 1024


def _round_up(x, m):
    return ((x + m - 1) // m) * m


# ---------------------------------------------------------------------------
# Fused path: both GCNConv layers in one kernel, A_norm^T resident in VMEM.
# ---------------------------------------------------------------------------
def _fused_kernel(xt_ref, w1_ref, b1_ref, w2_ref, b2_ref, at_ref, out_ref):
    """Feature-major fused forward.

    xt_ref : (F, Np)   padded transposed node features, compute dtype
    w*_ref : (F, F)    torch Linear weights as stored ([out, in]), f32
    b*_ref : (F, 1)    biases as columns, f32
    at_ref : (Np, Np)  padded A_norm^T, compute dtype (resident)
    out_ref: (F, Np)   transposed module output, f32
    """
    at = at_ref[...]
    cdt = at.dtype
    # Layer 1: transform first (PyG GCNConv order), then propagate once.
    wx1 = jnp.dot(w1_ref[...], xt_ref[...], preferred_element_type=jnp.float32)
    z1 = jnp.dot(wx1.astype(cdt), at,
                 preferred_element_type=jnp.float32) + b1_ref[...]
    h = jnp.tanh(z1)                                    # f32 tanh -> EUP slot
    # Layer 2.
    wx2 = jnp.dot(w2_ref[...], h.astype(cdt), preferred_element_type=jnp.float32)
    z2 = jnp.dot(wx2.astype(cdt), at,
                 preferred_element_type=jnp.float32) + b2_ref[...]
    out_ref[...] = z2.astype(out_ref.dtype)


def _fused_forward(at_pad, xt_c, w1, b1c, w2, b2c):
    f_in = xt_c.shape[0]
    f_out = w1.shape[0]
    n_pad = at_pad.shape[0]
    return pl.pallas_call(
        _fused_kernel,
        out_shape=jax.ShapeDtypeStruct((f_out, n_pad), jnp.float32),
        grid=(1,),
        in_specs=[
            pl.BlockSpec((f_in, n_pad), lambda i: (0, 0)),   # X^T (resident)
            pl.BlockSpec(w1.shape, lambda i: (0, 0)),        # W1
            pl.BlockSpec(b1c.shape, lambda i: (0, 0)),       # b1
            pl.BlockSpec(w2.shape, lambda i: (0, 0)),        # W2
            pl.BlockSpec(b2c.shape, lambda i: (0, 0)),       # b2
            pl.BlockSpec((n_pad, n_pad), lambda i: (0, 0)),  # A^T (resident)
        ],
        out_specs=pl.BlockSpec((f_out, n_pad), lambda i: (0, 0)),
        compiler_params=pltpu.CompilerParams(
            dimension_semantics=("arbitrary",),
            vmem_limit_bytes=_VMEM_LIMIT,
        ),
    )(xt_c, w1, b1c, w2, b2c, at_pad)


# ---------------------------------------------------------------------------
# Tiled fallback: one GCNConv layer, constant VMEM regardless of N.
# Column ("parallel") axis over output node tiles, contraction ("arbitrary")
# axis over node K-tiles with an f32 VMEM accumulator.
# ---------------------------------------------------------------------------
def _layer_tiled_kernel(wx_ref, b_ref, at_ref, out_ref, acc_ref, *, apply_tanh):
    k = pl.program_id(1)

    @pl.when(k == 0)
    def _():
        acc_ref[...] = jnp.zeros_like(acc_ref)

    acc_ref[...] += jnp.dot(wx_ref[...], at_ref[...],
                            preferred_element_type=jnp.float32)

    @pl.when(k == pl.num_programs(1) - 1)
    def _():
        z = acc_ref[...] + b_ref[...]
        if apply_tanh:
            z = jnp.tanh(z)
        out_ref[...] = z.astype(out_ref.dtype)


def _gcn_layer_tiled(at_pad, xt_c, w, b_col, *, apply_tanh, tile_n, tile_k,
                     out_dtype):
    n_pad = at_pad.shape[0]
    f_out = w.shape[0]
    assert n_pad % tile_n == 0 and n_pad % tile_k == 0
    assert tile_n % _LANE == 0 and tile_k % _LANE == 0

    # Transform first (tiny matmul, PyG order); propagation is streamed below.
    wx = jnp.dot(w, xt_c, preferred_element_type=jnp.float32).astype(at_pad.dtype)

    kernel = functools.partial(_layer_tiled_kernel, apply_tanh=apply_tanh)
    # NOTE(v7x): for best 2-TC balance pick tile_n so n_pad//tile_n is even/>=4.
    return pl.pallas_call(
        kernel,
        out_shape=jax.ShapeDtypeStruct((f_out, n_pad), out_dtype),
        grid=(n_pad // tile_n, n_pad // tile_k),
        in_specs=[
            pl.BlockSpec((f_out, tile_k), lambda j, k: (0, k)),   # WX K-tile
            pl.BlockSpec((f_out, 1), lambda j, k: (0, 0)),        # bias
            pl.BlockSpec((tile_k, tile_n), lambda j, k: (k, j)),  # A^T tile
        ],
        out_specs=pl.BlockSpec((f_out, tile_n), lambda j, k: (0, j)),
        scratch_shapes=[pltpu.VMEM((f_out, tile_n), jnp.float32)],
        compiler_params=pltpu.CompilerParams(
            dimension_semantics=("parallel", "arbitrary"),
            vmem_limit_bytes=_VMEM_LIMIT,
        ),
    )(wx, b_col, at_pad)


# ---------------------------------------------------------------------------
# Wrappers
# ---------------------------------------------------------------------------
def pad_adjacency(a_norm, *, compute_dtype=jnp.bfloat16, tile=512,
                  fused_bytes=_FUSED_A_BYTES):
    """Pad/transpose/cast the dense normalized adjacency ONCE; cache & reuse."""
    n = a_norm.shape[0]
    itemsize = jnp.dtype(compute_dtype).itemsize
    n128 = _round_up(n, _LANE)
    if n128 * n128 * itemsize <= fused_bytes:
        n_pad = n128                          # fused resident-A path
    else:
        n_pad = _round_up(n, tile)            # streamed / K-tiled path
    at = jnp.zeros((n_pad, n_pad), compute_dtype)
    return at.at[:n, :n].set(a_norm.T.astype(compute_dtype))


def h_derivatie_forward(at_pad, x, w1, b1, w2, b2, *,
                        tile_n=512, tile_k=512, force_tiled=False,
                        fused_bytes=_FUSED_A_BYTES):
    """out = GCNConv(W2,b2)( tanh( GCNConv(W1,b1)(x) ) ).

    `at_pad` is the padded transposed normalized adjacency from pad_adjacency()
    (built once per graph, not per forward). Weights are torch layout
    ([out, in]); biases are [out]. Returns node-major [N, 2*size_in].
    """
    N = x.shape[0]
    n_pad = at_pad.shape[0]
    cdt = at_pad.dtype

    # Feature-major node features, node axis zero-padded onto the lane dim.
    xt = jnp.zeros((x.shape[1], n_pad), jnp.float32).at[:, :N].set(x.T)
    xt_c = xt.astype(cdt)

    w1f = w1.astype(jnp.float32)
    w2f = w2.astype(jnp.float32)
    b1c = b1.reshape(-1, 1).astype(jnp.float32)
    b2c = b2.reshape(-1, 1).astype(jnp.float32)

    a_bytes = n_pad * n_pad * jnp.dtype(cdt).itemsize
    if (not force_tiled) and a_bytes <= fused_bytes:
        o_t = _fused_forward(at_pad, xt_c, w1f, b1c, w2f, b2c)
    else:
        tn = min(tile_n, n_pad)
        if n_pad % tn:
            tn = _LANE
        tk = min(tile_k, n_pad)
        if n_pad % tk:
            tk = _LANE
        h_t = _gcn_layer_tiled(at_pad, xt_c, w1f, b1c, apply_tanh=True,
                               tile_n=tn, tile_k=tk, out_dtype=cdt)
        o_t = _gcn_layer_tiled(at_pad, h_t, w2f, b2c, apply_tanh=False,
                               tile_n=tn, tile_k=tk, out_dtype=jnp.float32)
    return o_t[:, :N].T


def build_gcn_norm_adj(edge_index, num_nodes):
    """Dense D^{-1/2}(A+I)D^{-1/2} matching PyG gcn_norm (unweighted edges)."""
    src, dst = edge_index[0], edge_index[1]
    loops = jnp.arange(num_nodes, dtype=src.dtype)
    src = jnp.concatenate([src, loops])
    dst = jnp.concatenate([dst, loops])
    adj = jnp.zeros((num_nodes, num_nodes), jnp.float32).at[dst, src].add(1.0)
    deg = adj.sum(axis=1)  # degree at the aggregation (dst) index
    d_inv_sqrt = jnp.where(deg > 0, 1.0 / jnp.sqrt(deg), 0.0)
    return d_inv_sqrt[:, None] * adj * d_inv_sqrt[None, :]


def reference_fp32(a_norm, x, w1, b1, w2, b2):
    h = jnp.tanh(a_norm @ (x @ w1.T) + b1)
    return a_norm @ (h @ w2.T) + b2


def reference_matched(a_norm, x, w1, b1, w2, b2, cdt):
    """Same layout / casts / accumulation order as the fused kernel."""
    at = a_norm.T.astype(cdt)
    xt = x.T.astype(cdt)

    def layer(zt, w, b):
        wz = jnp.dot(w, zt, preferred_element_type=jnp.float32)
        return jnp.dot(wz.astype(cdt), at,
                       preferred_element_type=jnp.float32) + b[:, None]

    h = jnp.tanh(layer(xt, w1, b1))
    return layer(h.astype(cdt), w2, b2).T


if __name__ == "__main__":
    size_in = 8
    F = 2 * size_in          # GCNConv width in H_derivatie (size_in * 2)
    N = 300                  # nodes; padded to 384 lanes inside pad_adjacency

    key = jax.random.PRNGKey(0)
    k_x, k_e, k_w1, k_b1, k_w2, k_b2 = jax.random.split(key, 6)

    x = jax.random.normal(k_x, (N, F), dtype=jnp.float32)

    # Deterministic small graph: ring + shortcut edges, both directions.
    ring_src = jnp.arange(N, dtype=jnp.int32)
    ring_dst = (ring_src + 1) % N
    extra_src = jax.random.randint(k_e, (64,), 0, N, dtype=jnp.int32)
    extra_dst = (extra_src + 7) % N
    src = jnp.concatenate([ring_src, ring_dst, extra_src, extra_dst])
    dst = jnp.concatenate([ring_dst, ring_src, extra_dst, extra_src])
    edge_index = jnp.stack([src, dst], axis=0)

    a_norm = build_gcn_norm_adj(edge_index, N)

    # GCNConv parameters (torch layout: weight [out, in], bias [out]).
    w1 = jax.random.normal(k_w1, (F, F), jnp.float32) * (1.0 / jnp.sqrt(F))
    b1 = 0.1 * jax.random.normal(k_b1, (F,), jnp.float32)
    w2 = jax.random.normal(k_w2, (F, F), jnp.float32) * (1.0 / jnp.sqrt(F))
    b2 = 0.1 * jax.random.normal(k_b2, (F,), jnp.float32)

    # Padded / transposed / bf16 adjacency built ONCE (cached across forwards).
    at_pad = jax.block_until_ready(pad_adjacency(a_norm))

    fwd_fused = jax.jit(h_derivatie_forward)
    fwd_tiled = jax.jit(functools.partial(h_derivatie_forward,
                                          force_tiled=True,
                                          tile_n=128, tile_k=128))

    out = jax.block_until_ready(fwd_fused(at_pad, x, w1, b1, w2, b2))
    out_tiled = jax.block_until_ready(fwd_tiled(at_pad, x, w1, b1, w2, b2))

    ref_m = reference_matched(a_norm, x, w1, b1, w2, b2, jnp.bfloat16)
    ref_f32 = reference_fp32(a_norm, x, w1, b1, w2, b2)

    assert out.shape == (N, F)
    assert jnp.allclose(out, ref_m, rtol=5e-3, atol=5e-3)        # exact-math match
    assert jnp.allclose(out_tiled, ref_m, rtol=5e-3, atol=5e-3)  # K-tiled path
    assert jnp.allclose(out, ref_f32, rtol=5e-2, atol=5e-2)      # bf16-input tol

    print("KERNEL_OK")
</pallas_src>

<mosaic_0001>
module attributes {stable_mosaic.version = 11 : i64} {
  func.func @_fused_kernel(%arg0: i32, %arg1: memref<16x384xbf16, #tpu.memory_space<vmem>>, %arg2: memref<16x16xf32, #tpu.memory_space<vmem>>, %arg3: memref<16x1xf32, #tpu.memory_space<vmem>>, %arg4: memref<16x16xf32, #tpu.memory_space<vmem>>, %arg5: memref<16x1xf32, #tpu.memory_space<vmem>>, %arg6: memref<384x384xbf16, #tpu.memory_space<vmem>>, %arg7: memref<16x384xf32, #tpu.memory_space<vmem>>) attributes {dimension_semantics = [#tpu.dimension_semantics<arbitrary>], iteration_bounds = array<i64: 1>, scalar_prefetch = 0 : i64, scratch_operands = 0 : i64, tpu.core_type = #tpu.core_type<tc>, window_params = [{pipeline_mode = #tpu.pipeline_mode<synchronous>, transform_indices = @transform_0, window_bounds = array<i64: 16, 384>}, {pipeline_mode = #tpu.pipeline_mode<synchronous>, transform_indices = @transform_1, window_bounds = array<i64: 16, 16>}, {pipeline_mode = #tpu.pipeline_mode<synchronous>, transform_indices = @transform_2, window_bounds = array<i64: 16, 1>}, {pipeline_mode = #tpu.pipeline_mode<synchronous>, transform_indices = @transform_3, window_bounds = array<i64: 16, 16>}, {pipeline_mode = #tpu.pipeline_mode<synchronous>, transform_indices = @transform_4, window_bounds = array<i64: 16, 1>}, {pipeline_mode = #tpu.pipeline_mode<synchronous>, transform_indices = @transform_5, window_bounds = array<i64: 384, 384>}, {pipeline_mode = #tpu.pipeline_mode<synchronous>, transform_indices = @transform_6, window_bounds = array<i64: 16, 384>}]} {
    %c0 = arith.constant 0 : index
    %c0_0 = arith.constant 0 : index
    %0 = vector.load %arg6[%c0, %c0_0] : memref<384x384xbf16, #tpu.memory_space<vmem>>, vector<384x384xbf16>
    %c0_1 = arith.constant 0 : index
    %c0_2 = arith.constant 0 : index
    %1 = vector.load %arg2[%c0_1, %c0_2] : memref<16x16xf32, #tpu.memory_space<vmem>>, vector<16x16xf32>
    %c0_3 = arith.constant 0 : index
    %c0_4 = arith.constant 0 : index
    %2 = vector.load %arg1[%c0_3, %c0_4] : memref<16x384xbf16, #tpu.memory_space<vmem>>, vector<16x384xbf16>
    %cst = arith.constant dense<0.000000e+00> : vector<16x384xf32>
    %3 = tpu.matmul %1, %2, %cst {dimension_numbers = #tpu.dot_dimension_numbers<[1], [0], [0], [1], [0, 0, 1, 1], [], []>} : vector<16x16xf32>, vector<16x384xbf16>, vector<16x384xf32> -> vector<16x384xf32>
    %4 = arith.truncf %3 : vector<16x384xf32> to vector<16x384xbf16>
    %cst_5 = arith.constant dense<0.000000e+00> : vector<16x384xf32>
    %5 = tpu.matmul %4, %0, %cst_5 {dimension_numbers = #tpu.dot_dimension_numbers<[1], [0], [0], [1], [0, 0, 1, 1], [], []>} : vector<16x384xbf16>, vector<384x384xbf16>, vector<16x384xf32> -> vector<16x384xf32>
    %c0_6 = arith.constant 0 : index
    %c0_7 = arith.constant 0 : index
    %6 = vector.load %arg3[%c0_6, %c0_7] : memref<16x1xf32, #tpu.memory_space<vmem>>, vector<16x1xf32>
    %7 = vector.broadcast %6 : vector<16x1xf32> to vector<16x384xf32>
    %8 = arith.addf %5, %7 : vector<16x384xf32>
    %9 = math.tanh %8 : vector<16x384xf32>
    %c0_8 = arith.constant 0 : index
    %c0_9 = arith.constant 0 : index
    %10 = vector.load %arg4[%c0_8, %c0_9] : memref<16x16xf32, #tpu.memory_space<vmem>>, vector<16x16xf32>
    %11 = arith.truncf %9 : vector<16x384xf32> to vector<16x384xbf16>
    %cst_10 = arith.constant dense<0.000000e+00> : vector<16x384xf32>
    %12 = tpu.matmul %10, %11, %cst_10 {dimension_numbers = #tpu.dot_dimension_numbers<[1], [0], [0], [1], [0, 0, 1, 1], [], []>} : vector<16x16xf32>, vector<16x384xbf16>, vector<16x384xf32> -> vector<16x384xf32>
    %13 = arith.truncf %12 : vector<16x384xf32> to vector<16x384xbf16>
    %cst_11 = arith.constant dense<0.000000e+00> : vector<16x384xf32>
    %14 = tpu.matmul %13, %0, %cst_11 {dimension_numbers = #tpu.dot_dimension_numbers<[1], [0], [0], [1], [0, 0, 1, 1], [], []>} : vector<16x384xbf16>, vector<384x384xbf16>, vector<16x384xf32> -> vector<16x384xf32>
    %c0_12 = arith.constant 0 : index
    %c0_13 = arith.constant 0 : index
    %15 = vector.load %arg5[%c0_12, %c0_13] : memref<16x1xf32, #tpu.memory_space<vmem>>, vector<16x1xf32>
    %16 = vector.broadcast %15 : vector<16x1xf32> to vector<16x384xf32>
    %17 = arith.addf %14, %16 : vector<16x384xf32>
    %c0_14 = arith.constant 0 : index
    %c0_15 = arith.constant 0 : index
    %18 = vector.load %arg7[%c0_14, %c0_15] : memref<16x384xf32, #tpu.memory_space<vmem>>, vector<16x384xf32>
    tpu.vector_store %arg7[%c0_14, %c0_15], %17 {strides = array<i32>} : memref<16x384xf32, #tpu.memory_space<vmem>>, vector<16x384xf32>,
    return
  }
  func.func @transform_0(%arg0: i32) -> (i32, i32) {
    %c0_i32 = arith.constant 0 : i32
    %c0_i32_0 = arith.constant 0 : i32
    %c0_i32_1 = arith.constant 0 : i32
    return %c0_i32, %c0_i32_0 : i32, i32
  }
  func.func @transform_1(%arg0: i32) -> (i32, i32) {
    %c0_i32 = arith.constant 0 : i32
    %c0_i32_0 = arith.constant 0 : i32
    %c0_i32_1 = arith.constant 0 : i32
    return %c0_i32, %c0_i32_0 : i32, i32
  }
  func.func @transform_2(%arg0: i32) -> (i32, i32) {
    %c0_i32 = arith.constant 0 : i32
    %c0_i32_0 = arith.constant 0 : i32
    %c0_i32_1 = arith.constant 0 : i32
    return %c0_i32, %c0_i32_0 : i32, i32
  }
  func.func @transform_3(%arg0: i32) -> (i32, i32) {
    %c0_i32 = arith.constant 0 : i32
    %c0_i32_0 = arith.constant 0 : i32
    %c0_i32_1 = arith.constant 0 : i32
    return %c0_i32, %c0_i32_0 : i32, i32
  }
  func.func @transform_4(%arg0: i32) -> (i32, i32) {
    %c0_i32 = arith.constant 0 : i32
    %c0_i32_0 = arith.constant 0 : i32
    %c0_i32_1 = arith.constant 0 : i32
    return %c0_i32, %c0_i32_0 : i32, i32
  }
  func.func @transform_5(%arg0: i32) -> (i32, i32) {
    %c0_i32 = arith.constant 0 : i32
    %c0_i32_0 = arith.constant 0 : i32
    %c0_i32_1 = arith.constant 0 : i32
    return %c0_i32, %c0_i32_0 : i32, i32
  }
  func.func @transform_6(%arg0: i32) -> (i32, i32) {
    %c0_i32 = arith.constant 0 : i32
    %c0_i32_0 = arith.constant 0 : i32
    %c0_i32_1 = arith.constant 0 : i32
    return %c0_i32, %c0_i32_0 : i32, i32
  }
}

</mosaic_0001>

<llo_original>
// kernel: h_derivatie_forward.1
$region0: #{h_derivatie_forward.1}
  #allocation0 [shape = 'u32[]', space=smem, size = 0x4, offset = 0x4, fixed_abs, tag = 'smem constant byte address 0x4 - core index']
  #allocation1 [shape = 'u32[144,128]{1,0:T(1,128)}', space=vmem, size = 0x12000, scoped, tag = 'internal scratch']
  %s0 = inlined_call_operand.vmem [shape: bf16[16,384], index: 0, kind: input, shape index: {}]
  %s1 = inlined_call_operand.vmem [shape: f32[16,16], index: 1, kind: input, shape index: {}]
  %s2 = inlined_call_operand.vmem [shape: f32[16,1], index: 2, kind: input, shape index: {}]
  %s3 = inlined_call_operand.vmem [shape: f32[16,16], index: 3, kind: input, shape index: {}]
  %s4 = inlined_call_operand.vmem [shape: f32[16,1], index: 4, kind: input, shape index: {}]
  %s5 = inlined_call_operand.hbm [shape: bf16[384,384], index: 5, kind: input, shape index: {}]
  %s6 = inlined_call_operand.vmem [shape: f32[16,384], index: 6, kind: output, shape index: {}]
  %s7 = sld [smem:[#allocation0]]
  $region38: #{h_derivatie_forward.1} parent=0
    _
  %s9 = ssub.s32 1, %s7
  %s10 = scalar_select 0, %s9, %s7
  $region1: #{h_derivatie_forward.1} parent=0
    #allocation2 [shape = 'u8[294912]{0}', space=vmem, size = 0x48000, scoped, tag = 'input window, operand 5, single buffered']
    #allocation3 [shape = 's32[1]{0}', space=sflag, size = 0x4, scoped, tag = 'scoped memory for h_derivatie_forward.1']
    %11 = vsyncpa [#allocation3], 0
    // Predicated region
    $region2: #{h_derivatie_forward.1} parent=1 // pred_check
      _
    $region3: #{h_derivatie_forward.1} parent=1 // pred_check_branch
      %13 = sbr.rel (0) target = $region5
    $region4: #{h_derivatie_forward.1} parent=1 // pred_region
      _
    $region5: #{h_derivatie_forward.1} parent=1 // pred_fallthru
      _
    // Predicated region
    $region6: #{h_derivatie_forward.1} parent=1 // pred_check
      _
    $region7: #{h_derivatie_forward.1} parent=1 // pred_check_branch
      %15 = sbr.rel (0) target = $region9
    $region8: #{h_derivatie_forward.1} parent=1 // pred_region
      _
    $region9: #{h_derivatie_forward.1} parent=1 // pred_fallthru
      _
    // Predicated region
    $region10: #{h_derivatie_forward.1} parent=1 // pred_check
      _
    $region11: #{h_derivatie_forward.1} parent=1 // pred_check_branch
      %17 = sbr.rel (0) target = $region13
    $region12: #{h_derivatie_forward.1} parent=1 // pred_region
      _
    $region13: #{h_derivatie_forward.1} parent=1 // pred_fallthru
      _
    // Predicated region
    $region14: #{h_derivatie_forward.1} parent=1 // pred_check
      _
    $region15: #{h_derivatie_forward.1} parent=1 // pred_check_branch
      %19 = sbr.rel (0) target = $region17
    $region16: #{h_derivatie_forward.1} parent=1 // pred_region
      _
    $region17: #{h_derivatie_forward.1} parent=1 // pred_fallthru
      _
    // Predicated region
    $region18: #{h_derivatie_forward.1} parent=1 // pred_check
      _
    $region19: #{h_derivatie_forward.1} parent=1 // pred_check_branch
      %21 = sbr.rel (0) target = $region21
    $region20: #{h_derivatie_forward.1} parent=1 // pred_region
      _
    $region21: #{h_derivatie_forward.1} parent=1 // pred_fallthru
      _
    // Predicated region
    $region22: #{h_derivatie_forward.1} parent=1 // pred_check
      _
    $region23: #{h_derivatie_forward.1} parent=1 // pred_check_branch
      %23 = sbr.rel (0) target = $region25
    $region24: #{h_derivatie_forward.1} parent=1 // pred_region
      %s25 = ssub.s32 9216, 9216
      %26 = vsyncadd [#allocation3], %s25
      %s27 = sshll.u32 [#allocation2], 4
      %s28 = int_to_ptr.vmem [resolvable:$true] %s27
      %33 = dma.hbm_to_vmem [thread:$0]  %s5, 9216, %s28, [#allocation3], 192, 192, 12
    $region25: #{h_derivatie_forward.1} parent=1 // pred_fallthru
      _
    // Predicated region
    $region26: #{h_derivatie_forward.1} parent=1 // pred_check
      _
    $region27: #{h_derivatie_forward.1} parent=1 // pred_check_branch
      %35 = sbr.rel (0) target = $region29
    $region28: #{h_derivatie_forward.1} parent=1 // pred_region
      %36 = dma.done [#allocation3], 9216
    $region29: #{h_derivatie_forward.1} parent=1 // pred_fallthru
      _
    %v38 = vld [vmem:[#allocation2] sm:$0xff]
    %v39 = vld [vmem:[#allocation2 + $0x8] sm:$0xf]
    %v40 = vld [vmem:[#allocation2 + $0xc] sm:$0xff]
    %v41 = vld [vmem:[#allocation2 + $0x14] sm:$0xf]
    %v42 = vld [vmem:[#allocation2 + $0x18] sm:$0xff]
    %v43 = vld [vmem:[#allocation2 + $0x20] sm:$0xf]
    %v44 = vld [vmem:[#allocation2 + $0x24] sm:$0xff]
    %v45 = vld [vmem:[#allocation2 + $0x2c] sm:$0xf]
    %v46 = vld [vmem:[#allocation2 + $0x30] sm:$0xff]
    %v47 = vld [vmem:[#allocation2 + $0x38] sm:$0xf]
    %v48 = vld [vmem:[#allocation2 + $0x3c] sm:$0xff]
    %v49 = vld [vmem:[#allocation2 + $0x44] sm:$0xf]
    %v50 = vld [vmem:[#allocation2 + $0x48] sm:$0xff]
    %v51 = vld [vmem:[#allocation2 + $0x50] sm:$0xf]
    %v52 = vld [vmem:[#allocation2 + $0x54] sm:$0xff]
    %v53 = vld [vmem:[#allocation2 + $0x5c] sm:$0xf]
    %v54 = vld [vmem:[#allocation2 + $0x60] sm:$0xff]
    %v55 = vld [vmem:[#allocation2 + $0x68] sm:$0xf]
    %v56 = vld [vmem:[#allocation2 + $0x6c] sm:$0xff]
    %v57 = vld [vmem:[#allocation2 + $0x74] sm:$0xf]
    %v58 = vld [vmem:[#allocation2 + $0x78] sm:$0xff]
    %v59 = vld [vmem:[#allocation2 + $0x80] sm:$0xf]
    %v60 = vld [vmem:[#allocation2 + $0x84] sm:$0xff]
    %v61 = vld [vmem:[#allocation2 + $0x8c] sm:$0xf]
    %v62 = vld [vmem:[#allocation2 + $0x90] sm:$0xff]
    %v63 = vld [vmem:[#allocation2 + $0x98] sm:$0xf]
    %v64 = vld [vmem:[#allocation2 + $0x9c] sm:$0xff]
    %v65 = vld [vmem:[#allocation2 + $0xa4] sm:$0xf]
    %v66 = vld [vmem:[#allocation2 + $0xa8] sm:$0xff]
    %v67 = vld [vmem:[#allocation2 + $0xb0] sm:$0xf]
    %v68 = vld [vmem:[#allocation2 + $0xb4] sm:$0xff]
    %v69 = vld [vmem:[#allocation2 + $0xbc] sm:$0xf]
    %v70 = vld [vmem:[#allocation2 + $0xc0] sm:$0xff]
    %v71 = vld [vmem:[#allocation2 + $0xc8] sm:$0xf]
    %v72 = vld [vmem:[#allocation2 + $0xcc] sm:$0xff]
    %v73 = vld [vmem:[#allocation2 + $0xd4] sm:$0xf]
    %v74 = vld [vmem:[#allocation2 + $0xd8] sm:$0xff]
    %v75 = vld [vmem:[#allocation2 + $0xe0] sm:$0xf]
    %v76 = vld [vmem:[#allocation2 + $0xe4] sm:$0xff]
    %v77 = vld [vmem:[#allocation2 + $0xec] sm:$0xf]
    %v78 = vld [vmem:[#allocation2 + $0xf0] sm:$0xff]
    %v79 = vld [vmem:[#allocation2 + $0xf8] sm:$0xf]
    %v80 = vld [vmem:[#allocation2 + $0xfc] sm:$0xff]
    %v81 = vld [vmem:[#allocation2 + $0x104] sm:$0xf]
    %v82 = vld [vmem:[#allocation2 + $0x108] sm:$0xff]
    %v83 = vld [vmem:[#allocation2 + $0x110] sm:$0xf]
    %v84 = vld [vmem:[#allocation2 + $0x114] sm:$0xff]
    %v85 = vld [vmem:[#allocation2 + $0x11c] sm:$0xf]
    %v86 = vld [vmem:[#allocation2 + $0x120] sm:$0xff]
    %v87 = vld [vmem:[#allocation2 + $0x128] sm:$0xf]
    %v88 = vld [vmem:[#allocation2 + $0x12c] sm:$0xff]
    %v89 = vld [vmem:[#allocation2 + $0x134] sm:$0xf]
    %v90 = vld [vmem:[#allocation2 + $0x138] sm:$0xff]
    %v91 = vld [vmem:[#allocation2 + $0x140] sm:$0xf]
    %v92 = vld [vmem:[#allocation2 + $0x144] sm:$0xff]
    %v93 = vld [vmem:[#allocation2 + $0x14c] sm:$0xf]
    %v94 = vld [vmem:[#allocation2 + $0x150] sm:$0xff]
    %v95 = vld [vmem:[#allocation2 + $0x158] sm:$0xf]
    %v96 = vld [vmem:[#allocation2 + $0x15c] sm:$0xff]
    %v97 = vld [vmem:[#allocation2 + $0x164] sm:$0xf]
    %v98 = vld [vmem:[#allocation2 + $0x168] sm:$0xff]
    %v99 = vld [vmem:[#allocation2 + $0x170] sm:$0xf]
    %v100 = vld [vmem:[#allocation2 + $0x174] sm:$0xff]
    %v101 = vld [vmem:[#allocation2 + $0x17c] sm:$0xf]
    %v102 = vld [vmem:[#allocation2 + $0x180] sm:$0xff]
    %v103 = vld [vmem:[#allocation2 + $0x188] sm:$0xf]
    %v104 = vld [vmem:[#allocation2 + $0x18c] sm:$0xff]
    %v105 = vld [vmem:[#allocation2 + $0x194] sm:$0xf]
    %v106 = vld [vmem:[#allocation2 + $0x198] sm:$0xff]
    %v107 = vld [vmem:[#allocation2 + $0x1a0] sm:$0xf]
    %v108 = vld [vmem:[#allocation2 + $0x1a4] sm:$0xff]
    %v109 = vld [vmem:[#allocation2 + $0x1ac] sm:$0xf]
    %v110 = vld [vmem:[#allocation2 + $0x1b0] sm:$0xff]
    %v111 = vld [vmem:[#allocation2 + $0x1b8] sm:$0xf]
    %v112 = vld [vmem:[#allocation2 + $0x1bc] sm:$0xff]
    %v113 = vld [vmem:[#allocation2 + $0x1c4] sm:$0xf]
    %v114 = vld [vmem:[#allocation2 + $0x1c8] sm:$0xff]
    %v115 = vld [vmem:[#allocation2 + $0x1d0] sm:$0xf]
    %v116 = vld [vmem:[#allocation2 + $0x1d4] sm:$0xff]
    %v117 = vld [vmem:[#allocation2 + $0x1dc] sm:$0xf]
    %v118 = vld [vmem:[#allocation2 + $0x1e0] sm:$0xff]
    %v119 = vld [vmem:[#allocation2 + $0x1e8] sm:$0xf]
    %v120 = vld [vmem:[#allocation2 + $0x1ec] sm:$0xff]
    %v121 = vld [vmem:[#allocation2 + $0x1f4] sm:$0xf]
    %v122 = vld [vmem:[#allocation2 + $0x1f8] sm:$0xff]
    %v123 = vld [vmem:[#allocation2 + $0x200] sm:$0xf]
    %v124 = vld [vmem:[#allocation2 + $0x204] sm:$0xff]
    %v125 = vld [vmem:[#allocation2 + $0x20c] sm:$0xf]
    %v126 = vld [vmem:[#allocation2 + $0x210] sm:$0xff]
    %v127 = vld [vmem:[#allocation2 + $0x218] sm:$0xf]
    %v128 = vld [vmem:[#allocation2 + $0x21c] sm:$0xff]
    %v129 = vld [vmem:[#allocation2 + $0x224] sm:$0xf]
    %v130 = vld [vmem:[#allocation2 + $0x228] sm:$0xff]
    %v131 = vld [vmem:[#allocation2 + $0x230] sm:$0xf]
    %v132 = vld [vmem:[#allocation2 + $0x234] sm:$0xff]
    %v133 = vld [vmem:[#allocation2 + $0x23c] sm:$0xf]
    %v134 = vld [vmem:[%s1] sm:$0xff]
    %v135 = vld [vmem:[%s1 + $0x8] sm:$0xff]
    %v136 = vld [vmem:[%s0] sm:$0xff]
    %v137 = vld [vmem:[%s0 + $0x8] sm:$0xf]
    %v138 = vld [vmem:[%s0 + $0xc] sm:$0xff]
    %v139 = vld [vmem:[%s0 + $0x14] sm:$0xf]
    %v144 = vunpack.c.l.b16 %v136
    %v145 = vunpack.c.h.b16 %v136
    %v146 = vunpack.c.l.b16 %v137
    %v147 = vunpack.c.l.b16 %v138
    %v148 = vunpack.c.h.b16 %v138
    %v149 = vunpack.c.l.b16 %v139
    %v150 = vpack.c.b16 %v147, %v144
    %v151 = vpack.c.b16 %v148, %v145
    %v152 = vpack.c.b16 %v149, %v146
    %vm156 = vcmask 130048
    %v158 = vsel %vm156, %v134, 0
    %v161 = vsel %vm156, %v135, 0
    %163 = vmatprep.subr.bf16.mxu0 %v151
    %164 = vmatpush1.bf16.msra.mxu0 %v150
    %165 = vmatprep.subr.bf16.mxu0 0
    %166 = vmatpush1.bf16.msra.mxu0 0
    %167 = vmatprep.subr.bf16.mxu0 0
    %168 = vmatpush1.bf16.msra.mxu0 0
    %169 = vmatprep.subr.bf16.mxu0 0
    %170 = vmatpush1.bf16.msra.mxu0 0
    %171 = vmatprep.subr.bf16.mxu0 0
    %172 = vmatpush1.bf16.msra.mxu0 0
    %173 = vmatprep.subr.bf16.mxu0 0
    %174 = vmatpush1.bf16.msra.mxu0 0
    %175 = vmatprep.subr.bf16.mxu0 0
    %176 = vmatpush1.bf16.msra.mxu0 0
    %177 = vmatprep.subr.bf16.mxu0 0
    %178 = vmatpush1.bf16.msra.mxu0 0
    %179 = vmatprep.subr.bf16.mxu0 0
    %180 = vmatpush1.bf16.msra.mxu0 0
    %181 = vmatprep.subr.bf16.mxu0 0
    %182 = vmatpush1.bf16.msra.mxu0 0
    %183 = vmatprep.subr.bf16.mxu0 0
    %184 = vmatpush1.bf16.msra.mxu0 0
    %185 = vmatprep.subr.bf16.mxu0 0
    %186 = vmatpush1.bf16.msra.mxu0 0
    %187 = vmatprep.subr.bf16.mxu0 0
    %188 = vmatpush1.bf16.msra.mxu0 0
    %189 = vmatprep.subr.bf16.mxu0 0
    %190 = vmatpush1.bf16.msra.mxu0 0
    %191 = vmatprep.subr.bf16.mxu0 0
    %192 = vmatpush1.bf16.msra.mxu0 0
    %193 = vmatprep.subr.bf16.mxu0 0
    %194 = vmatpush1.bf16.msra.mxu0 0
    %195 = vmatprep.mubr.f32.mxu0 0.0
    %196 = vmatmul.mubr.f32.gmra.mrb[0].mxu0 %v158
    %v197 = vpop.f32.mrb[0].mxu0
    %v198 = vadd.f32 0.0, %v197
    %v199 = vpop.f32.mrb[0].mxu0
    %v200 = vadd.f32 0.0, %v199
    %201 = vmatprep.mubr.f32.mxu0 0.0
    %202 = vmatmul.mubr.f32.gmra.mrb[0].mxu0 %v161
    %v203 = vpop.f32.mrb[0].mxu0
    %v204 = vadd.f32 0.0, %v203
    %v205 = vpop.f32.mrb[0].mxu0
    %v206 = vadd.f32 0.0, %v205
    %207 = vdwg.mxu0
    %208 = vmatprep.subr.bf16.mxu0 0
    %209 = vmatpush1.bf16.msra.mxu0 %v152
    %210 = vmatprep.subr.bf16.mxu0 0
    %211 = vmatpush1.bf16.msra.mxu0 0
    %212 = vmatprep.subr.bf16.mxu0 0
    %213 = vmatpush1.bf16.msra.mxu0 0
    %214 = vmatprep.subr.bf16.mxu0 0
    %215 = vmatpush1.bf16.msra.mxu0 0
    %216 = vmatprep.subr.bf16.mxu0 0
    %217 = vmatpush1.bf16.msra.mxu0 0
    %218 = vmatprep.subr.bf16.mxu0 0
    %219 = vmatpush1.bf16.msra.mxu0 0
    %220 = vmatprep.subr.bf16.mxu0 0
    %221 = vmatpush1.bf16.msra.mxu0 0
    %222 = vmatprep.subr.bf16.mxu0 0
    %223 = vmatpush1.bf16.msra.mxu0 0
    %224 = vmatprep.subr.bf16.mxu0 0
    %225 = vmatpush1.bf16.msra.mxu0 0
    %226 = vmatprep.subr.bf16.mxu0 0
    %227 = vmatpush1.bf16.msra.mxu0 0
    %228 = vmatprep.subr.bf16.mxu0 0
    %229 = vmatpush1.bf16.msra.mxu0 0
    %230 = vmatprep.subr.bf16.mxu0 0
    %231 = vmatpush1.bf16.msra.mxu0 0
    %232 = vmatprep.subr.bf16.mxu0 0
    %233 = vmatpush1.bf16.msra.mxu0 0
    %234 = vmatprep.subr.bf16.mxu0 0
    %235 = vmatpush1.bf16.msra.mxu0 0
    %236 = vmatprep.subr.bf16.mxu0 0
    %237 = vmatpush1.bf16.msra.mxu0 0
    %238 = vmatprep.subr.bf16.mxu0 0
    %239 = vmatpush1.bf16.msra.mxu0 0
    %240 = vmatprep.mubr.f32.mxu0 0.0
    %241 = vmatmul.mubr.f32.gmra.mrb[0].mxu0 %v158
    %v242 = vpop.f32.mrb[0].mxu0
    %v243 = vadd.f32 0.0, %v242
    %v244 = vpop.f32.mrb[0].mxu0
    %245 = vmatprep.mubr.f32.mxu0 0.0
    %246 = vmatmul.mubr.f32.gmra.mrb[0].mxu0 %v161
    %v247 = vpop.f32.mrb[0].mxu0
    %v248 = vadd.f32 0.0, %v247
    %v249 = vpop.f32.mrb[0].mxu0
    %250 = vdwg.mxu0
    %v251 = vpack.c.bf16 %v204, %v198
    %v252 = vpack.c.bf16 %v206, %v200
    %v253 = vpack.c.bf16 %v248, %v243
    %v254 = vld [vmem:[%s2] sm:$0xff]
    %v255 = vld [vmem:[%s2 + $0x8] sm:$0xff]
    %257 = vset.pattern.permute.xlu0 0
    %258 = vperm.xlu0 %257, %v254
    %v259 = vpop.permute.xlu0 %258
    %262 = vset.pattern.permute.xlu0 0
    %263 = vperm.xlu0 %262, %v255
    %v264 = vpop.permute.xlu0 %263
    %v362 = vunpack.c.l.b16 %v38
    %v363 = vunpack.c.h.b16 %v38
    %v364 = vunpack.c.l.b16 %v39
    %v365 = vunpack.c.l.b16 %v40
    %v366 = vunpack.c.h.b16 %v40
    %v367 = vunpack.c.l.b16 %v41
    %v368 = vunpack.c.l.b16 %v42
    %v369 = vunpack.c.h.b16 %v42
    %v370 = vunpack.c.l.b16 %v43
    %v371 = vunpack.c.l.b16 %v44
    %v372 = vunpack.c.h.b16 %v44
    %v373 = vunpack.c.l.b16 %v45
    %v374 = vunpack.c.l.b16 %v46
    %v375 = vunpack.c.h.b16 %v46
    %v376 = vunpack.c.l.b16 %v47
    %v377 = vunpack.c.l.b16 %v48
    %v378 = vunpack.c.h.b16 %v48
    %v379 = vunpack.c.l.b16 %v49
    %v380 = vunpack.c.l.b16 %v50
    %v381 = vunpack.c.h.b16 %v50
    %v382 = vunpack.c.l.b16 %v51
    %v383 = vunpack.c.l.b16 %v52
    %v384 = vunpack.c.h.b16 %v52
    %v385 = vunpack.c.l.b16 %v53
    %v386 = vunpack.c.l.b16 %v54
    %v387 = vunpack.c.h.b16 %v54
    %v388 = vunpack.c.l.b16 %v55
    %v389 = vunpack.c.l.b16 %v56
    %v390 = vunpack.c.h.b16 %v56
    %v391 = vunpack.c.l.b16 %v57
    %v392 = vunpack.c.l.b16 %v58
    %v393 = vunpack.c.h.b16 %v58
    %v394 = vunpack.c.l.b16 %v59
    %v395 = vunpack.c.l.b16 %v60
    %v396 = vunpack.c.h.b16 %v60
    %v397 = vunpack.c.l.b16 %v61
    %v398 = vunpack.c.l.b16 %v62
    %v399 = vunpack.c.h.b16 %v62
    %v400 = vunpack.c.l.b16 %v63
    %v401 = vunpack.c.l.b16 %v64
    %v402 = vunpack.c.h.b16 %v64
    %v403 = vunpack.c.l.b16 %v65
    %v404 = vunpack.c.l.b16 %v66
    %v405 = vunpack.c.h.b16 %v66
    %v406 = vunpack.c.l.b16 %v67
    %v407 = vunpack.c.l.b16 %v68
    %v408 = vunpack.c.h.b16 %v68
    %v409 = vunpack.c.l.b16 %v69
    %v410 = vunpack.c.l.b16 %v70
    %v411 = vunpack.c.h.b16 %v70
    %v412 = vunpack.c.l.b16 %v71
    %v413 = vunpack.c.l.b16 %v72
    %v414 = vunpack.c.h.b16 %v72
    %v415 = vunpack.c.l.b16 %v73
    %v416 = vunpack.c.l.b16 %v74
    %v417 = vunpack.c.h.b16 %v74
    %v418 = vunpack.c.l.b16 %v75
    %v419 = vunpack.c.l.b16 %v76
    %v420 = vunpack.c.h.b16 %v76
    %v421 = vunpack.c.l.b16 %v77
    %v422 = vunpack.c.l.b16 %v78
    %v423 = vunpack.c.h.b16 %v78
    %v424 = vunpack.c.l.b16 %v79
    %v425 = vunpack.c.l.b16 %v80
    %v426 = vunpack.c.h.b16 %v80
    %v427 = vunpack.c.l.b16 %v81
    %v428 = vunpack.c.l.b16 %v82
    %v429 = vunpack.c.h.b16 %v82
    %v430 = vunpack.c.l.b16 %v83
    %v431 = vunpack.c.l.b16 %v84
    %v432 = vunpack.c.h.b16 %v84
    %v433 = vunpack.c.l.b16 %v85
    %v434 = vunpack.c.l.b16 %v86
    %v435 = vunpack.c.h.b16 %v86
    %v436 = vunpack.c.l.b16 %v87
    %v437 = vunpack.c.l.b16 %v88
    %v438 = vunpack.c.h.b16 %v88
    %v439 = vunpack.c.l.b16 %v89
    %v440 = vunpack.c.l.b16 %v90
    %v441 = vunpack.c.h.b16 %v90
    %v442 = vunpack.c.l.b16 %v91
    %v443 = vunpack.c.l.b16 %v92
    %v444 = vunpack.c.h.b16 %v92
    %v445 = vunpack.c.l.b16 %v93
    %v446 = vunpack.c.l.b16 %v94
    %v447 = vunpack.c.h.b16 %v94
    %v448 = vunpack.c.l.b16 %v95
    %v449 = vunpack.c.l.b16 %v96
    %v450 = vunpack.c.h.b16 %v96
    %v451 = vunpack.c.l.b16 %v97
    %v452 = vunpack.c.l.b16 %v98
    %v453 = vunpack.c.h.b16 %v98
    %v454 = vunpack.c.l.b16 %v99
    %v455 = vunpack.c.l.b16 %v100
    %v456 = vunpack.c.h.b16 %v100
    %v457 = vunpack.c.l.b16 %v101
    %v458 = vunpack.c.l.b16 %v102
    %v459 = vunpack.c.h.b16 %v102
    %v460 = vunpack.c.l.b16 %v103
    %v461 = vunpack.c.l.b16 %v104
    %v462 = vunpack.c.h.b16 %v104
    %v463 = vunpack.c.l.b16 %v105
    %v464 = vunpack.c.l.b16 %v106
    %v465 = vunpack.c.h.b16 %v106
    %v466 = vunpack.c.l.b16 %v107
    %v467 = vunpack.c.l.b16 %v108
    %v468 = vunpack.c.h.b16 %v108
    %v469 = vunpack.c.l.b16 %v109
    %v470 = vunpack.c.l.b16 %v110
    %v471 = vunpack.c.h.b16 %v110
    %v472 = vunpack.c.l.b16 %v111
    %v473 = vunpack.c.l.b16 %v112
    %v474 = vunpack.c.h.b16 %v112
    %v475 = vunpack.c.l.b16 %v113
    %v476 = vunpack.c.l.b16 %v114
    %v477 = vunpack.c.h.b16 %v114
    %v478 = vunpack.c.l.b16 %v115
    %v479 = vunpack.c.l.b16 %v116
    %v480 = vunpack.c.h.b16 %v116
    %v481 = vunpack.c.l.b16 %v117
    %v482 = vunpack.c.l.b16 %v118
    %v483 = vunpack.c.h.b16 %v118
    %v484 = vunpack.c.l.b16 %v119
    %v485 = vunpack.c.l.b16 %v120
    %v486 = vunpack.c.h.b16 %v120
    %v487 = vunpack.c.l.b16 %v121
    %v488 = vunpack.c.l.b16 %v122
    %v489 = vunpack.c.h.b16 %v122
    %v490 = vunpack.c.l.b16 %v123
    %v491 = vunpack.c.l.b16 %v124
    %v492 = vunpack.c.h.b16 %v124
    %v493 = vunpack.c.l.b16 %v125
    %v494 = vunpack.c.l.b16 %v126
    %v495 = vunpack.c.h.b16 %v126
    %v496 = vunpack.c.l.b16 %v127
    %v497 = vunpack.c.l.b16 %v128
    %v498 = vunpack.c.h.b16 %v128
    %v499 = vunpack.c.l.b16 %v129
    %v500 = vunpack.c.l.b16 %v130
    %v501 = vunpack.c.h.b16 %v130
    %v502 = vunpack.c.l.b16 %v131
    %v503 = vunpack.c.l.b16 %v132
    %v504 = vunpack.c.h.b16 %v132
    %v505 = vunpack.c.l.b16 %v133
    %v506 = vpack.c.b16 %v365, %v362
    %v507 = vpack.c.b16 %v366, %v363
    %v508 = vpack.c.b16 %v367, %v364
    %v509 = vpack.c.b16 %v371, %v368
    %v510 = vpack.c.b16 %v372, %v369
    %v511 = vpack.c.b16 %v373, %v370
    %v512 = vpack.c.b16 %v377, %v374
    %v513 = vpack.c.b16 %v378, %v375
    %v514 = vpack.c.b16 %v379, %v376
    %v515 = vpack.c.b16 %v383, %v380
    %v516 = vpack.c.b16 %v384, %v381
    %v517 = vpack.c.b16 %v385, %v382
    %v518 = vpack.c.b16 %v389, %v386
    %v519 = vpack.c.b16 %v390, %v387
    %v520 = vpack.c.b16 %v391, %v388
    %v521 = vpack.c.b16 %v395, %v392
    %v522 = vpack.c.b16 %v396, %v393
    %v523 = vpack.c.b16 %v397, %v394
    %v524 = vpack.c.b16 %v401, %v398
    %v525 = vpack.c.b16 %v402, %v399
    %v526 = vpack.c.b16 %v403, %v400
    %v527 = vpack.c.b16 %v407, %v404
    %v528 = vpack.c.b16 %v408, %v405
    %v529 = vpack.c.b16 %v409, %v406
    %v530 = vpack.c.b16 %v413, %v410
    %v531 = vpack.c.b16 %v414, %v411
    %v532 = vpack.c.b16 %v415, %v412
    %v533 = vpack.c.b16 %v419, %v416
    %v534 = vpack.c.b16 %v420, %v417
    %v535 = vpack.c.b16 %v421, %v418
    %v536 = vpack.c.b16 %v425, %v422
    %v537 = vpack.c.b16 %v426, %v423
    %v538 = vpack.c.b16 %v427, %v424
    %v539 = vpack.c.b16 %v431, %v428
    %v540 = vpack.c.b16 %v432, %v429
    %v541 = vpack.c.b16 %v433, %v430
    %v542 = vpack.c.b16 %v437, %v434
    %v543 = vpack.c.b16 %v438, %v435
    %v544 = vpack.c.b16 %v439, %v436
    %v545 = vpack.c.b16 %v443, %v440
    %v546 = vpack.c.b16 %v444, %v441
    %v547 = vpack.c.b16 %v445, %v442
    %v548 = vpack.c.b16 %v449, %v446
    %v549 = vpack.c.b16 %v450, %v447
    %v550 = vpack.c.b16 %v451, %v448
    %v551 = vpack.c.b16 %v455, %v452
    %v552 = vpack.c.b16 %v456, %v453
    %v553 = vpack.c.b16 %v457, %v454
    %v554 = vpack.c.b16 %v461, %v458
    %v555 = vpack.c.b16 %v462, %v459
    %v556 = vpack.c.b16 %v463, %v460
    %v557 = vpack.c.b16 %v467, %v464
    %v558 = vpack.c.b16 %v468, %v465
    %v559 = vpack.c.b16 %v469, %v466
    %v560 = vpack.c.b16 %v473, %v470
    %v561 = vpack.c.b16 %v474, %v471
    %v562 = vpack.c.b16 %v475, %v472
    %v563 = vpack.c.b16 %v479, %v476
    %v564 = vpack.c.b16 %v480, %v477
    %v565 = vpack.c.b16 %v481, %v478
    %v566 = vpack.c.b16 %v485, %v482
    %v567 = vpack.c.b16 %v486, %v483
    %v568 = vpack.c.b16 %v487, %v484
    %v569 = vpack.c.b16 %v491, %v488
    %v570 = vpack.c.b16 %v492, %v489
    %v571 = vpack.c.b16 %v493, %v490
    %v572 = vpack.c.b16 %v497, %v494
    %v573 = vpack.c.b16 %v498, %v495
    %v574 = vpack.c.b16 %v499, %v496
    %v575 = vpack.c.b16 %v503, %v500
    %v576 = vpack.c.b16 %v504, %v501
    %v577 = vpack.c.b16 %v505, %v502
    %650 = vmatprep.subr.bf16.mxu0 %v507
    %651 = vmatpush1.bf16.msra.mxu0 %v506
    %652 = vmatprep.subr.bf16.mxu0 %v510
    %653 = vmatpush1.bf16.msra.mxu0 %v509
    %654 = vmatprep.subr.bf16.mxu0 %v513
    %655 = vmatpush1.bf16.msra.mxu0 %v512
    %656 = vmatprep.subr.bf16.mxu0 %v516
    %657 = vmatpush1.bf16.msra.mxu0 %v515
    %658 = vmatprep.subr.bf16.mxu0 %v519
    %659 = vmatpush1.bf16.msra.mxu0 %v518
    %660 = vmatprep.subr.bf16.mxu0 %v522
    %661 = vmatpush1.bf16.msra.mxu0 %v521
    %662 = vmatprep.subr.bf16.mxu0 %v525
    %663 = vmatpush1.bf16.msra.mxu0 %v524
    %664 = vmatprep.subr.bf16.mxu0 %v528
    %665 = vmatpush1.bf16.msra.mxu0 %v527
    %666 = vmatprep.subr.bf16.mxu0 %v531
    %667 = vmatpush1.bf16.msra.mxu0 %v530
    %668 = vmatprep.subr.bf16.mxu0 %v534
    %669 = vmatpush1.bf16.msra.mxu0 %v533
    %670 = vmatprep.subr.bf16.mxu0 %v537
    %671 = vmatpush1.bf16.msra.mxu0 %v536
    %672 = vmatprep.subr.bf16.mxu0 %v540
    %673 = vmatpush1.bf16.msra.mxu0 %v539
    %674 = vmatprep.subr.bf16.mxu0 %v543
    %675 = vmatpush1.bf16.msra.mxu0 %v542
    %676 = vmatprep.subr.bf16.mxu0 %v546
    %677 = vmatpush1.bf16.msra.mxu0 %v545
    %678 = vmatprep.subr.bf16.mxu0 %v549
    %679 = vmatpush1.bf16.msra.mxu0 %v548
    %680 = vmatprep.subr.bf16.mxu0 %v552
    %681 = vmatpush1.bf16.msra.mxu0 %v551
    %682 = vmatprep.mubr.bf16.mxu0 %v252
    %683 = vmatmul.mubr.bf16.gmra.mrb[0].mxu0 %v251
    %v684 = vpop.f32.mrb[0].mxu0
    %v685 = vadd.f32 %v259, %v684
    %v686 = vpop.f32.mrb[0].mxu0
    %v687 = vadd.f32 %v259, %v686
    %v688 = vpop.f32.mrb[0].mxu0
    %v689 = vadd.f32 %v264, %v688
    %v690 = vpop.f32.mrb[0].mxu0
    %v691 = vadd.f32 %v264, %v690
    %692 = vdwg.mxu0
    %693 = vmatprep.subr.bf16.mxu0 %v555
    %694 = vmatpush1.bf16.msra.mxu0 %v554
    %695 = vmatprep.subr.bf16.mxu0 %v558
    %696 = vmatpush1.bf16.msra.mxu0 %v557
    %697 = vmatprep.subr.bf16.mxu0 %v561
    %698 = vmatpush1.bf16.msra.mxu0 %v560
    %699 = vmatprep.subr.bf16.mxu0 %v564
    %700 = vmatpush1.bf16.msra.mxu0 %v563
    %701 = vmatprep.subr.bf16.mxu0 %v567
    %702 = vmatpush1.bf16.msra.mxu0 %v566
    %703 = vmatprep.subr.bf16.mxu0 %v570
    %704 = vmatpush1.bf16.msra.mxu0 %v569
    %705 = vmatprep.subr.bf16.mxu0 %v573
    %706 = vmatpush1.bf16.msra.mxu0 %v572
    %707 = vmatprep.subr.bf16.mxu0 %v576
    %708 = vmatpush1.bf16.msra.mxu0 %v575
    %709 = vmatprep.subr.bf16.mxu0 0
    %710 = vmatpush1.bf16.msra.mxu0 0
    %711 = vmatprep.subr.bf16.mxu0 0
    %712 = vmatpush1.bf16.msra.mxu0 0
    %713 = vmatprep.subr.bf16.mxu0 0
    %714 = vmatpush1.bf16.msra.mxu0 0
    %715 = vmatprep.subr.bf16.mxu0 0
    %716 = vmatpush1.bf16.msra.mxu0 0
    %717 = vmatprep.subr.bf16.mxu0 0
    %718 = vmatpush1.bf16.msra.mxu0 0
    %719 = vmatprep.subr.bf16.mxu0 0
    %720 = vmatpush1.bf16.msra.mxu0 0
    %721 = vmatprep.subr.bf16.mxu0 0
    %722 = vmatpush1.bf16.msra.mxu0 0
    %723 = vmatprep.subr.bf16.mxu0 0
    %724 = vmatpush1.bf16.msra.mxu0 0
    %725 = vmatprep.mubr.bf16.mxu0 0
    %726 = vmatmul.mubr.bf16.gmra.mrb[0].mxu0 %v253
    %v727 = vpop.f32.mrb[0].mxu0
    %v728 = vadd.f32 %v685, %v727
    %v729 = vpop.f32.mrb[0].mxu0
    %v730 = vadd.f32 %v687, %v729
    %v731 = vpop.f32.mrb[0].mxu0
    %v732 = vadd.f32 %v689, %v731
    %v733 = vpop.f32.mrb[0].mxu0
    %v734 = vadd.f32 %v691, %v733
    %735 = vdwg.mxu0
    %736 = vmatprep.subr.bf16.mxu0 0
    %737 = vmatpush1.bf16.msra.mxu0 %v508
    %738 = vmatprep.subr.bf16.mxu0 0
    %739 = vmatpush1.bf16.msra.mxu0 %v511
    %740 = vmatprep.subr.bf16.mxu0 0
    %741 = vmatpush1.bf16.msra.mxu0 %v514
    %742 = vmatprep.subr.bf16.mxu0 0
    %743 = vmatpush1.bf16.msra.mxu0 %v517
    %744 = vmatprep.subr.bf16.mxu0 0
    %745 = vmatpush1.bf16.msra.mxu0 %v520
    %746 = vmatprep.subr.bf16.mxu0 0
    %747 = vmatpush1.bf16.msra.mxu0 %v523
    %748 = vmatprep.subr.bf16.mxu0 0
    %749 = vmatpush1.bf16.msra.mxu0 %v526
    %750 = vmatprep.subr.bf16.mxu0 0
    %751 = vmatpush1.bf16.msra.mxu0 %v529
    %752 = vmatprep.subr.bf16.mxu0 0
    %753 = vmatpush1.bf16.msra.mxu0 %v532
    %754 = vmatprep.subr.bf16.mxu0 0
    %755 = vmatpush1.bf16.msra.mxu0 %v535
    %756 = vmatprep.subr.bf16.mxu0 0
    %757 = vmatpush1.bf16.msra.mxu0 %v538
    %758 = vmatprep.subr.bf16.mxu0 0
    %759 = vmatpush1.bf16.msra.mxu0 %v541
    %760 = vmatprep.subr.bf16.mxu0 0
    %761 = vmatpush1.bf16.msra.mxu0 %v544
    %762 = vmatprep.subr.bf16.mxu0 0
    %763 = vmatpush1.bf16.msra.mxu0 %v547
    %764 = vmatprep.subr.bf16.mxu0 0
    %765 = vmatpush1.bf16.msra.mxu0 %v550
    %766 = vmatprep.subr.bf16.mxu0 0
    %767 = vmatpush1.bf16.msra.mxu0 %v553
    %768 = vmatprep.mubr.bf16.mxu0 %v252
    %769 = vmatmul.mubr.bf16.gmra.mrb[0].mxu0 %v251
    %v770 = vpop.f32.mrb[0].mxu0
    %v771 = vadd.f32 %v259, %v770
    %v772 = vpop.f32.mrb[0].mxu0
    %v773 = vpop.f32.mrb[0].mxu0
    %v774 = vadd.f32 %v264, %v773
    %v775 = vpop.f32.mrb[0].mxu0
    %776 = vdwg.mxu0
    %777 = vmatprep.subr.bf16.mxu0 0
    %778 = vmatpush1.bf16.msra.mxu0 %v556
    %779 = vmatprep.subr.bf16.mxu0 0
    %780 = vmatpush1.bf16.msra.mxu0 %v559
    %781 = vmatprep.subr.bf16.mxu0 0
    %782 = vmatpush1.bf16.msra.mxu0 %v562
    %783 = vmatprep.subr.bf16.mxu0 0
    %784 = vmatpush1.bf16.msra.mxu0 %v565
    %785 = vmatprep.subr.bf16.mxu0 0
    %786 = vmatpush1.bf16.msra.mxu0 %v568
    %787 = vmatprep.subr.bf16.mxu0 0
    %788 = vmatpush1.bf16.msra.mxu0 %v571
    %789 = vmatprep.subr.bf16.mxu0 0
    %790 = vmatpush1.bf16.msra.mxu0 %v574
    %791 = vmatprep.subr.bf16.mxu0 0
    %792 = vmatpush1.bf16.msra.mxu0 %v577
    %793 = vmatprep.subr.bf16.mxu0 0
    %794 = vmatpush1.bf16.msra.mxu0 0
    %795 = vmatprep.subr.bf16.mxu0 0
    %796 = vmatpush1.bf16.msra.mxu0 0
    %797 = vmatprep.subr.bf16.mxu0 0
    %798 = vmatpush1.bf16.msra.mxu0 0
    %799 = vmatprep.subr.bf16.mxu0 0
    %800 = vmatpush1.bf16.msra.mxu0 0
    %801 = vmatprep.subr.bf16.mxu0 0
    %802 = vmatpush1.bf16.msra.mxu0 0
    %803 = vmatprep.subr.bf16.mxu0 0
    %804 = vmatpush1.bf16.msra.mxu0 0
    %805 = vmatprep.subr.bf16.mxu0 0
    %806 = vmatpush1.bf16.msra.mxu0 0
    %807 = vmatprep.subr.bf16.mxu0 0
    %808 = vmatpush1.bf16.msra.mxu0 0
    %809 = vmatprep.mubr.bf16.mxu0 0
    %810 = vmatmul.mubr.bf16.gmra.mrb[0].mxu0 %v253
    %v811 = vpop.f32.mrb[0].mxu0
    %v812 = vadd.f32 %v771, %v811
    %v813 = vpop.f32.mrb[0].mxu0
    %v814 = vpop.f32.mrb[0].mxu0
    %v815 = vadd.f32 %v774, %v814
    %v816 = vpop.f32.mrb[0].mxu0
    %817 = vdwg.mxu0
    %v818 = vtanh.pop %v728
    %v819 = vtanh.pop %v730
    %v820 = vtanh.pop %v812
    %v821 = vtanh.pop %v732
    %v822 = vtanh.pop %v734
    %v823 = vtanh.pop %v815
    %v824 = vld [vmem:[%s3] sm:$0xff]
    %v825 = vld [vmem:[%s3 + $0x8] sm:$0xff]
    %v826 = vpack.c.bf16 %v821, %v818
    %v827 = vpack.c.bf16 %v822, %v819
    %v828 = vpack.c.bf16 %v823, %v820
    %v830 = vsel %vm156, %v824, 0
    %v833 = vsel %vm156, %v825, 0
    %835 = vmatprep.subr.bf16.mxu0 %v827
    %836 = vmatpush1.bf16.msra.mxu0 %v826
    %837 = vmatprep.subr.bf16.mxu0 0
    %838 = vmatpush1.bf16.msra.mxu0 0
    %839 = vmatprep.subr.bf16.mxu0 0
    %840 = vmatpush1.bf16.msra.mxu0 0
    %841 = vmatprep.subr.bf16.mxu0 0
    %842 = vmatpush1.bf16.msra.mxu0 0
    %843 = vmatprep.subr.bf16.mxu0 0
    %844 = vmatpush1.bf16.msra.mxu0 0
    %845 = vmatprep.subr.bf16.mxu0 0
    %846 = vmatpush1.bf16.msra.mxu0 0
    %847 = vmatprep.subr.bf16.mxu0 0
    %848 = vmatpush1.bf16.msra.mxu0 0
    %849 = vmatprep.subr.bf16.mxu0 0
    %850 = vmatpush1.bf16.msra.mxu0 0
    %851 = vmatprep.subr.bf16.mxu0 0
    %852 = vmatpush1.bf16.msra.mxu0 0
    %853 = vmatprep.subr.bf16.mxu0 0
    %854 = vmatpush1.bf16.msra.mxu0 0
    %855 = vmatprep.subr.bf16.mxu0 0
    %856 = vmatpush1.bf16.msra.mxu0 0
    %857 = vmatprep.subr.bf16.mxu0 0
    %858 = vmatpush1.bf16.msra.mxu0 0
    %859 = vmatprep.subr.bf16.mxu0 0
    %860 = vmatpush1.bf16.msra.mxu0 0
    %861 = vmatprep.subr.bf16.mxu0 0
    %862 = vmatpush1.bf16.msra.mxu0 0
    %863 = vmatprep.subr.bf16.mxu0 0
    %864 = vmatpush1.bf16.msra.mxu0 0
    %865 = vmatprep.subr.bf16.mxu0 0
    %866 = vmatpush1.bf16.msra.mxu0 0
    %867 = vmatprep.mubr.f32.mxu0 0.0
    %868 = vmatmul.mubr.f32.gmra.mrb[0].mxu0 %v830
    %v869 = vpop.f32.mrb[0].mxu0
    %v870 = vadd.f32 0.0, %v869
    %v871 = vpop.f32.mrb[0].mxu0
    %v872 = vadd.f32 0.0, %v871
    %873 = vmatprep.mubr.f32.mxu0 0.0
    %874 = vmatmul.mubr.f32.gmra.mrb[0].mxu0 %v833
    %v875 = vpop.f32.mrb[0].mxu0
    %v876 = vadd.f32 0.0, %v875
    %v877 = vpop.f32.mrb[0].mxu0
    %v878 = vadd.f32 0.0, %v877
    %879 = vdwg.mxu0
    %880 = vmatprep.subr.bf16.mxu0 0
    %881 = vmatpush1.bf16.msra.mxu0 %v828
    %882 = vmatprep.subr.bf16.mxu0 0
    %883 = vmatpush1.bf16.msra.mxu0 0
    %884 = vmatprep.subr.bf16.mxu0 0
    %885 = vmatpush1.bf16.msra.mxu0 0
    %886 = vmatprep.subr.bf16.mxu0 0
    %887 = vmatpush1.bf16.msra.mxu0 0
    %888 = vmatprep.subr.bf16.mxu0 0
    %889 = vmatpush1.bf16.msra.mxu0 0
    %890 = vmatprep.subr.bf16.mxu0 0
    %891 = vmatpush1.bf16.msra.mxu0 0
    %892 = vmatprep.subr.bf16.mxu0 0
    %893 = vmatpush1.bf16.msra.mxu0 0
    %894 = vmatprep.subr.bf16.mxu0 0
    %895 = vmatpush1.bf16.msra.mxu0 0
    %896 = vmatprep.subr.bf16.mxu0 0
    %897 = vmatpush1.bf16.msra.mxu0 0
    %898 = vmatprep.subr.bf16.mxu0 0
    %899 = vmatpush1.bf16.msra.mxu0 0
    %900 = vmatprep.subr.bf16.mxu0 0
    %901 = vmatpush1.bf16.msra.mxu0 0
    %902 = vmatprep.subr.bf16.mxu0 0
    %903 = vmatpush1.bf16.msra.mxu0 0
    %904 = vmatprep.subr.bf16.mxu0 0
    %905 = vmatpush1.bf16.msra.mxu0 0
    %906 = vmatprep.subr.bf16.mxu0 0
    %907 = vmatpush1.bf16.msra.mxu0 0
    %908 = vmatprep.subr.bf16.mxu0 0
    %909 = vmatpush1.bf16.msra.mxu0 0
    %910 = vmatprep.subr.bf16.mxu0 0
    %911 = vmatpush1.bf16.msra.mxu0 0
    %912 = vmatprep.mubr.f32.mxu0 0.0
    %913 = vmatmul.mubr.f32.gmra.mrb[0].mxu0 %v830
    %v914 = vpop.f32.mrb[0].mxu0
    %v915 = vadd.f32 0.0, %v914
    %v916 = vpop.f32.mrb[0].mxu0
    %917 = vmatprep.mubr.f32.mxu0 0.0
    %918 = vmatmul.mubr.f32.gmra.mrb[0].mxu0 %v833
    %v919 = vpop.f32.mrb[0].mxu0
    %v920 = vadd.f32 0.0, %v919
    %v921 = vpop.f32.mrb[0].mxu0
    %922 = vdwg.mxu0
    %v923 = vpack.c.bf16 %v876, %v870
    %v924 = vpack.c.bf16 %v878, %v872
    %v925 = vpack.c.bf16 %v920, %v915
    %v926 = vld [vmem:[%s4] sm:$0xff]
    %v927 = vld [vmem:[%s4 + $0x8] sm:$0xff]
    %929 = vset.pattern.permute.xlu0 0
    %930 = vperm.xlu0 %929, %v926
    %v931 = vpop.permute.xlu0 %930
    %934 = vset.pattern.permute.xlu0 0
    %935 = vperm.xlu0 %934, %v927
    %v936 = vpop.permute.xlu0 %935
    %938 = vmatprep.subr.bf16.mxu0 %v507
    %939 = vmatpush1.bf16.msra.mxu0 %v506
    %940 = vmatprep.subr.bf16.mxu0 %v510
    %941 = vmatpush1.bf16.msra.mxu0 %v509
    %942 = vmatprep.subr.bf16.mxu0 %v513
    %943 = vmatpush1.bf16.msra.mxu0 %v512
    %944 = vmatprep.subr.bf16.mxu0 %v516
    %945 = vmatpush1.bf16.msra.mxu0 %v515
    %946 = vmatprep.subr.bf16.mxu0 %v519
    %947 = vmatpush1.bf16.msra.mxu0 %v518
    %948 = vmatprep.subr.bf16.mxu0 %v522
    %949 = vmatpush1.bf16.msra.mxu0 %v521
    %950 = vmatprep.subr.bf16.mxu0 %v525
    %951 = vmatpush1.bf16.msra.mxu0 %v524
    %952 = vmatprep.subr.bf16.mxu0 %v528
    %953 = vmatpush1.bf16.msra.mxu0 %v527
    %954 = vmatprep.subr.bf16.mxu0 %v531
    %955 = vmatpush1.bf16.msra.mxu0 %v530
    %956 = vmatprep.subr.bf16.mxu0 %v534
    %957 = vmatpush1.bf16.msra.mxu0 %v533
    %958 = vmatprep.subr.bf16.mxu0 %v537
    %959 = vmatpush1.bf16.msra.mxu0 %v536
    %960 = vmatprep.subr.bf16.mxu0 %v540
    %961 = vmatpush1.bf16.msra.mxu0 %v539
    %962 = vmatprep.subr.bf16.mxu0 %v543
    %963 = vmatpush1.bf16.msra.mxu0 %v542
    %964 = vmatprep.subr.bf16.mxu0 %v546
    %965 = vmatpush1.bf16.msra.mxu0 %v545
    %966 = vmatprep.subr.bf16.mxu0 %v549
    %967 = vmatpush1.bf16.msra.mxu0 %v548
    %968 = vmatprep.subr.bf16.mxu0 %v552
    %969 = vmatpush1.bf16.msra.mxu0 %v551
    %970 = vmatprep.mubr.bf16.mxu0 %v924
    %971 = vmatmul.mubr.bf16.gmra.mrb[0].mxu0 %v923
    %v972 = vpop.f32.mrb[0].mxu0
    %v973 = vadd.f32 %v931, %v972
    %v974 = vpop.f32.mrb[0].mxu0
    %v975 = vadd.f32 %v931, %v974
    %v976 = vpop.f32.mrb[0].mxu0
    %v977 = vadd.f32 %v936, %v976
    %v978 = vpop.f32.mrb[0].mxu0
    %v979 = vadd.f32 %v936, %v978
    %980 = vdwg.mxu0
    %981 = vmatprep.subr.bf16.mxu0 %v555
    %982 = vmatpush1.bf16.msra.mxu0 %v554
    %983 = vmatprep.subr.bf16.mxu0 %v558
    %984 = vmatpush1.bf16.msra.mxu0 %v557
    %985 = vmatprep.subr.bf16.mxu0 %v561
    %986 = vmatpush1.bf16.msra.mxu0 %v560
    %987 = vmatprep.subr.bf16.mxu0 %v564
    %988 = vmatpush1.bf16.msra.mxu0 %v563
    %989 = vmatprep.subr.bf16.mxu0 %v567
    %990 = vmatpush1.bf16.msra.mxu0 %v566
    %991 = vmatprep.subr.bf16.mxu0 %v570
    %992 = vmatpush1.bf16.msra.mxu0 %v569
    %993 = vmatprep.subr.bf16.mxu0 %v573
    %994 = vmatpush1.bf16.msra.mxu0 %v572
    %995 = vmatprep.subr.bf16.mxu0 %v576
    %996 = vmatpush1.bf16.msra.mxu0 %v575
    %997 = vmatprep.subr.bf16.mxu0 0
    %998 = vmatpush1.bf16.msra.mxu0 0
    %999 = vmatprep.subr.bf16.mxu0 0
    %1000 = vmatpush1.bf16.msra.mxu0 0
    %1001 = vmatprep.subr.bf16.mxu0 0
    %1002 = vmatpush1.bf16.msra.mxu0 0
    %1003 = vmatprep.subr.bf16.mxu0 0
    %1004 = vmatpush1.bf16.msra.mxu0 0
    %1005 = vmatprep.subr.bf16.mxu0 0
    %1006 = vmatpush1.bf16.msra.mxu0 0
    %1007 = vmatprep.subr.bf16.mxu0 0
    %1008 = vmatpush1.bf16.msra.mxu0 0
    %1009 = vmatprep.subr.bf16.mxu0 0
    %1010 = vmatpush1.bf16.msra.mxu0 0
    %1011 = vmatprep.subr.bf16.mxu0 0
    %1012 = vmatpush1.bf16.msra.mxu0 0
    %1013 = vmatprep.mubr.bf16.mxu0 0
    %1014 = vmatmul.mubr.bf16.gmra.mrb[0].mxu0 %v925
    %v1015 = vpop.f32.mrb[0].mxu0
    %v1016 = vadd.f32 %v973, %v1015
    %v1017 = vpop.f32.mrb[0].mxu0
    %v1018 = vadd.f32 %v975, %v1017
    %v1019 = vpop.f32.mrb[0].mxu0
    %v1020 = vadd.f32 %v977, %v1019
    %v1021 = vpop.f32.mrb[0].mxu0
    %v1022 = vadd.f32 %v979, %v1021
    %1023 = vdwg.mxu0
    %1024 = vmatprep.subr.bf16.mxu0 0
    %1025 = vmatpush1.bf16.msra.mxu0 %v508
    %1026 = vmatprep.subr.bf16.mxu0 0
    %1027 = vmatpush1.bf16.msra.mxu0 %v511
    %1028 = vmatprep.subr.bf16.mxu0 0
    %1029 = vmatpush1.bf16.msra.mxu0 %v514
    %1030 = vmatprep.subr.bf16.mxu0 0
    %1031 = vmatpush1.bf16.msra.mxu0 %v517
    %1032 = vmatprep.subr.bf16.mxu0 0
    %1033 = vmatpush1.bf16.msra.mxu0 %v520
    %1034 = vmatprep.subr.bf16.mxu0 0
    %1035 = vmatpush1.bf16.msra.mxu0 %v523
    %1036 = vmatprep.subr.bf16.mxu0 0
    %1037 = vmatpush1.bf16.msra.mxu0 %v526
    %1038 = vmatprep.subr.bf16.mxu0 0
    %1039 = vmatpush1.bf16.msra.mxu0 %v529
    %1040 = vmatprep.subr.bf16.mxu0 0
    %1041 = vmatpush1.bf16.msra.mxu0 %v532
    %1042 = vmatprep.subr.bf16.mxu0 0
    %1043 = vmatpush1.bf16.msra.mxu0 %v535
    %1044 = vmatprep.subr.bf16.mxu0 0
    %1045 = vmatpush1.bf16.msra.mxu0 %v538
    %1046 = vmatprep.subr.bf16.mxu0 0
    %1047 = vmatpush1.bf16.msra.mxu0 %v541
    %1048 = vmatprep.subr.bf16.mxu0 0
    %1049 = vmatpush1.bf16.msra.mxu0 %v544
    %1050 = vmatprep.subr.bf16.mxu0 0
    %1051 = vmatpush1.bf16.msra.mxu0 %v547
    %1052 = vmatprep.subr.bf16.mxu0 0
    %1053 = vmatpush1.bf16.msra.mxu0 %v550
    %1054 = vmatprep.subr.bf16.mxu0 0
    %1055 = vmatpush1.bf16.msra.mxu0 %v553
    %1056 = vmatprep.mubr.bf16.mxu0 %v924
    %1057 = vmatmul.mubr.bf16.gmra.mrb[0].mxu0 %v923
    %v1058 = vpop.f32.mrb[0].mxu0
    %v1059 = vadd.f32 %v931, %v1058
    %v1060 = vpop.f32.mrb[0].mxu0
    %v1061 = vpop.f32.mrb[0].mxu0
    %v1062 = vadd.f32 %v936, %v1061
    %v1063 = vpop.f32.mrb[0].mxu0
    %1064 = vdwg.mxu0
    %1065 = vmatprep.subr.bf16.mxu0 0
    %1066 = vmatpush1.bf16.msra.mxu0 %v556
    %1067 = vmatprep.subr.bf16.mxu0 0
    %1068 = vmatpush1.bf16.msra.mxu0 %v559
    %1069 = vmatprep.subr.bf16.mxu0 0
    %1070 = vmatpush1.bf16.msra.mxu0 %v562
    %1071 = vmatprep.subr.bf16.mxu0 0
    %1072 = vmatpush1.bf16.msra.mxu0 %v565
    %1073 = vmatprep.subr.bf16.mxu0 0
    %1074 = vmatpush1.bf16.msra.mxu0 %v568
    %1075 = vmatprep.subr.bf16.mxu0 0
    %1076 = vmatpush1.bf16.msra.mxu0 %v571
    %1077 = vmatprep.subr.bf16.mxu0 0
    %1078 = vmatpush1.bf16.msra.mxu0 %v574
    %1079 = vmatprep.subr.bf16.mxu0 0
    %1080 = vmatpush1.bf16.msra.mxu0 %v577
    %1081 = vmatprep.subr.bf16.mxu0 0
    %1082 = vmatpush1.bf16.msra.mxu0 0
    %1083 = vmatprep.subr.bf16.mxu0 0
    %1084 = vmatpush1.bf16.msra.mxu0 0
    %1085 = vmatprep.subr.bf16.mxu0 0
    %1086 = vmatpush1.bf16.msra.mxu0 0
    %1087 = vmatprep.subr.bf16.mxu0 0
    %1088 = vmatpush1.bf16.msra.mxu0 0
    %1089 = vmatprep.subr.bf16.mxu0 0
    %1090 = vmatpush1.bf16.msra.mxu0 0
    %1091 = vmatprep.subr.bf16.mxu0 0
    %1092 = vmatpush1.bf16.msra.mxu0 0
    %1093 = vmatprep.subr.bf16.mxu0 0
    %1094 = vmatpush1.bf16.msra.mxu0 0
    %1095 = vmatprep.subr.bf16.mxu0 0
    %1096 = vmatpush1.bf16.msra.mxu0 0
    %1097 = vmatprep.mubr.bf16.mxu0 0
    %1098 = vmatmul.mubr.bf16.gmra.mrb[0].mxu0 %v925
    %v1099 = vpop.f32.mrb[0].mxu0
    %v1100 = vadd.f32 %v1059, %v1099
    %v1101 = vpop.f32.mrb[0].mxu0
    %v1102 = vpop.f32.mrb[0].mxu0
    %v1103 = vadd.f32 %v1062, %v1102
    %v1104 = vpop.f32.mrb[0].mxu0
    %1105 = vdwg.mxu0
    %1106 = vst [vmem:[%s6] sm:$0xff] %v1016
    %1107 = vst [vmem:[%s6 + $0x8] sm:$0xff] %v1018
    %1108 = vst [vmem:[%s6 + $0x10] sm:$0xff] %v1100
    %1109 = vst [vmem:[%s6 + $0x18] sm:$0xff] %v1020
    %1110 = vst [vmem:[%s6 + $0x20] sm:$0xff] %v1022
    %1111 = vst [vmem:[%s6 + $0x28] sm:$0xff] %v1103
    // Predicated region
    $region30: #{h_derivatie_forward.1} parent=1 // pred_check
      _
    $region31: #{h_derivatie_forward.1} parent=1 // pred_check_branch
      %1113 = sbr.rel (0) target = $region33
    $region32: #{h_derivatie_forward.1} parent=1 // pred_region
      _
    $region33: #{h_derivatie_forward.1} parent=1 // pred_fallthru
      _
    // Predicated region
    $region34: #{h_derivatie_forward.1} parent=1 // pred_check
      _
    $region35: #{h_derivatie_forward.1} parent=1 // pred_check_branch
      %1115 = sbr.rel (0) target = $region37
    $region36: #{h_derivatie_forward.1} parent=1 // pred_region
      _
    $region37: #{h_derivatie_forward.1} parent=1 // pred_fallthru
      _
    %1116 = vsyncpa [#allocation3], 1

</llo_original>
